<compile_context>
chip_gen: v5e
topology: v5e:2x2
jax: 0.10.0
libtpu: 0.0.40
codegen_flags: <defaults>
</compile_context>

<pallas_src>
import math

import jax
import jax.numpy as jnp
from jax import lax
from jax.experimental import pallas as pl
from jax.experimental.pallas import tpu as pltpu

LANES = 128
SUBLANES = 8
MAX_TILE_ROWS = 2048   # 2048*128*4B = 1 MiB per f32 input block


def _make_hinge_dis_kernel(tile_rows, total_rows, group_rows, needs_mask):
    groups = tile_rows // group_rows
    hint_ok = (group_rows & (group_rows - 1)) == 0  # power-of-two -> alignment hint

    def kernel(fake_ref, real_ref, lr_ref, lf_ref):
        step = pl.program_id(0)

        @pl.when(step == 0)
        def _():
            lr_ref[...] = jnp.zeros_like(lr_ref)
            lf_ref[...] = jnp.zeros_like(lf_ref)

        if needs_mask:
            # number of rows of this tile that lie inside the real input
            rem = total_rows - step * tile_rows
            local_rows = lax.broadcasted_iota(jnp.int32, (group_rows, LANES), 0)

        def body(g, carry):
            acc_r, acc_f = carry
            base = g * group_rows
            if hint_ok:
                base = pl.multiple_of(base, group_rows)
            real = real_ref[pl.ds(base, group_rows), :].astype(jnp.float32)
            fake = fake_ref[pl.ds(base, group_rows), :].astype(jnp.float32)
            hr = jnp.maximum(1.0 - real, 0.0)
            hf = jnp.maximum(1.0 + fake, 0.0)
            if needs_mask:
                valid = (local_rows + base) < rem
                hr = jnp.where(valid, hr, 0.0)
                hf = jnp.where(valid, hf, 0.0)
            # collapse this small group onto 8 sublanes: leading-axis sum is
            # whole-vreg VPU adds with only a handful of live vregs.
            hr = hr.reshape(group_rows // SUBLANES, SUBLANES, LANES).sum(axis=0)
            hf = hf.reshape(group_rows // SUBLANES, SUBLANES, LANES).sum(axis=0)
            return acc_r + hr, acc_f + hf

        zeros = jnp.zeros((SUBLANES, LANES), jnp.float32)
        unroll = True if groups <= 8 else 4
        acc_r, acc_f = lax.fori_loop(0, groups, body, (zeros, zeros),
                                     unroll=unroll)

        # accumulate straight into the VMEM-resident (8,128) output blocks
        lr_ref[...] += acc_r
        lf_ref[...] += acc_f

    return kernel


def loss_hinge_dis(dis_fake, dis_real):
    # TODO(synk): list-input branch of the PyTorch module (multi-scale
    # discriminator outputs) not implemented; only the tensor path is translated.
    assert dis_fake.shape == dis_real.shape
    batch = dis_fake.shape[0]          # PyTorch len(tensor) == first-dim size
    n_elems = dis_fake.size

    # native-dtype sublane packing: 8 rows/vreg for 32-bit, 16 for bf16, 32 for int8
    itemsize = jnp.dtype(dis_fake.dtype).itemsize
    row_align = max(SUBLANES, SUBLANES * (4 // max(1, itemsize)))
    chunk = LANES * row_align

    padded_elems = pl.cdiv(n_elems, chunk) * chunk
    fake_flat = dis_fake.reshape(-1)
    real_flat = dis_real.reshape(-1)
    pad = padded_elems - n_elems
    if pad:
        # Only reached when n_elems is not a multiple of the dtype's native
        # (sublane x 128) tile (not the case for typical NCHW logits).
        # Neutral pad values: relu(1 - (+1)) = 0 and relu(1 + (-1)) = 0.
        real_flat = jnp.pad(real_flat, (0, pad), constant_values=1)
        fake_flat = jnp.pad(fake_flat, (0, pad), constant_values=-1)

    rows = padded_elems // LANES                 # multiple of row_align (>= 8)
    fake2d = fake_flat.reshape(rows, LANES)
    real2d = real_flat.reshape(rows, LANES)

    tile_rows = rows if rows <= MAX_TILE_ROWS else MAX_TILE_ROWS
    num_tiles = pl.cdiv(rows, tile_rows)
    needs_mask = (rows % tile_rows) != 0         # partial last block -> mask it
    group_rows = math.gcd(tile_rows, 64)         # divides tile_rows, >= 8

    kernel = _make_hinge_dis_kernel(tile_rows, rows, group_rows, needs_mask)

    out_real, out_fake = pl.pallas_call(
        kernel,
        out_shape=(
            jax.ShapeDtypeStruct((SUBLANES, LANES), jnp.float32),
            jax.ShapeDtypeStruct((SUBLANES, LANES), jnp.float32),
        ),
        grid_spec=pltpu.PrefetchScalarGridSpec(
            num_scalar_prefetch=0,
            grid=(num_tiles,),
            in_specs=[
                pl.BlockSpec((tile_rows, LANES), lambda i: (i, 0)),
                pl.BlockSpec((tile_rows, LANES), lambda i: (i, 0)),
            ],
            out_specs=[
                pl.BlockSpec((SUBLANES, LANES), lambda i: (0, 0)),
                pl.BlockSpec((SUBLANES, LANES), lambda i: (0, 0)),
            ],
        ),
        compiler_params=pltpu.CompilerParams(
            dimension_semantics=("arbitrary",),
        ),
    )(fake2d, real2d)

    # Tiny host-side finalization: sum the (8,128) partials and scale.
    inv = 1.0 / (float(n_elems) * float(batch))
    loss_real = jnp.sum(out_real) * inv
    loss_fake = jnp.sum(out_fake) * inv
    return loss_real, loss_fake


if __name__ == "__main__":
    key = jax.random.PRNGKey(0)
    k_fake, k_real = jax.random.split(key)
    # shapes consistent with discriminator logits: NCHW = (2, 4, 16, 16)
    dis_fake = jax.random.normal(k_fake, (2, 4, 16, 16), dtype=jnp.float32)
    dis_real = jax.random.normal(k_real, (2, 4, 16, 16), dtype=jnp.float32)

    loss_real, loss_fake = loss_hinge_dis(dis_fake, dis_real)
    jax.block_until_ready((loss_real, loss_fake))

    # reference check in plain JAX (same semantics as the PyTorch module)
    batch = dis_fake.shape[0]
    ref_real = jnp.mean(jnp.maximum(1.0 - dis_real, 0.0)) / batch
    ref_fake = jnp.mean(jnp.maximum(1.0 + dis_fake, 0.0)) / batch
    assert jnp.allclose(loss_real, ref_real, rtol=1e-5, atol=1e-6)
    assert jnp.allclose(loss_fake, ref_fake, rtol=1e-5, atol=1e-6)

    print("KERNEL_OK")
</pallas_src>

<mosaic_0001>
module attributes {stable_mosaic.version = 11 : i64} {
  func.func @kernel(%arg0: i32, %arg1: memref<16x128xf32, #tpu.memory_space<vmem>>, %arg2: memref<16x128xf32, #tpu.memory_space<vmem>>, %arg3: memref<8x128xf32, #tpu.memory_space<vmem>>, %arg4: memref<8x128xf32, #tpu.memory_space<vmem>>) attributes {dimension_semantics = [#tpu.dimension_semantics<arbitrary>], iteration_bounds = array<i64: 1>, scalar_prefetch = 0 : i64, scratch_operands = 0 : i64, tpu.core_type = #tpu.core_type<tc>, window_params = [{transform_indices = @transform_0, window_bounds = array<i64: 16, 128>}, {transform_indices = @transform_1, window_bounds = array<i64: 16, 128>}, {pipeline_mode = #tpu.pipeline_mode<synchronous>, transform_indices = @transform_2, window_bounds = array<i64: 8, 128>}, {pipeline_mode = #tpu.pipeline_mode<synchronous>, transform_indices = @transform_3, window_bounds = array<i64: 8, 128>}]} {
    %c0_i32 = arith.constant 0 : i32
    %0 = arith.cmpi eq, %arg0, %c0_i32 : i32
    %1 = arith.extui %0 : i1 to i32
    %c0_i32_0 = arith.constant 0 : i32
    %2 = arith.cmpi ne, %1, %c0_i32_0 : i32
    scf.if %2 {
      %cst_17 = arith.constant 0.000000e+00 : f32
      %30 = vector.broadcast %cst_17 : f32 to vector<8x128xf32>
      %c0_18 = arith.constant 0 : index
      %c0_19 = arith.constant 0 : index
      %31 = vector.load %arg3[%c0_18, %c0_19] : memref<8x128xf32, #tpu.memory_space<vmem>>, vector<8x128xf32>
      tpu.vector_store %arg3[%c0_18, %c0_19], %30 {strides = array<i32>} : memref<8x128xf32, #tpu.memory_space<vmem>>, vector<8x128xf32>,
      %cst_20 = arith.constant 0.000000e+00 : f32
      %32 = vector.broadcast %cst_20 : f32 to vector<8x128xf32>
      %c0_21 = arith.constant 0 : index
      %c0_22 = arith.constant 0 : index
      %33 = vector.load %arg4[%c0_21, %c0_22] : memref<8x128xf32, #tpu.memory_space<vmem>>, vector<8x128xf32>
      tpu.vector_store %arg4[%c0_21, %c0_22], %32 {strides = array<i32>} : memref<8x128xf32, #tpu.memory_space<vmem>>, vector<8x128xf32>,
    } else {
    }
    %cst = arith.constant 0.000000e+00 : f32
    %3 = vector.broadcast %cst : f32 to vector<8x128xf32>
    %c0_i32_1 = arith.constant 0 : i32
    %c16_i32 = arith.constant 16 : i32
    %4 = arith.muli %c0_i32_1, %c16_i32 : i32
    %5 = tpu.assume_multiple %4, 16 : i32
    %6 = arith.index_cast %5 : i32 to index
    %c0 = arith.constant 0 : index
    %7 = vector.load %arg2[%6, %c0] : memref<16x128xf32, #tpu.memory_space<vmem>>, vector<16x128xf32>
    %8 = arith.index_cast %5 : i32 to index
    %c0_2 = arith.constant 0 : index
    %9 = vector.load %arg1[%8, %c0_2] : memref<16x128xf32, #tpu.memory_space<vmem>>, vector<16x128xf32>
    %cst_3 = arith.constant 1.000000e+00 : f32
    %10 = vector.broadcast %cst_3 : f32 to vector<16x128xf32>
    %11 = arith.subf %10, %7 : vector<16x128xf32>
    %cst_4 = arith.constant 0.000000e+00 : f32
    %12 = vector.broadcast %cst_4 : f32 to vector<16x128xf32>
    %13 = arith.maximumf %11, %12 : vector<16x128xf32>
    %cst_5 = arith.constant 1.000000e+00 : f32
    %14 = vector.broadcast %cst_5 : f32 to vector<16x128xf32>
    %15 = arith.addf %14, %9 : vector<16x128xf32>
    %cst_6 = arith.constant 0.000000e+00 : f32
    %16 = vector.broadcast %cst_6 : f32 to vector<16x128xf32>
    %17 = arith.maximumf %15, %16 : vector<16x128xf32>
    %18 = vector.shape_cast %13 : vector<16x128xf32> to vector<2x8x128xf32>
    %cst_7 = arith.constant dense<0.000000e+00> : vector<8x128xf32>
    %19 = vector.multi_reduction <add>, %18, %cst_7 [0] : vector<2x8x128xf32> to vector<8x128xf32>
    %20 = vector.shape_cast %17 : vector<16x128xf32> to vector<2x8x128xf32>
    %cst_8 = arith.constant dense<0.000000e+00> : vector<8x128xf32>
    %21 = vector.multi_reduction <add>, %20, %cst_8 [0] : vector<2x8x128xf32> to vector<8x128xf32>
    %22 = arith.addf %3, %19 : vector<8x128xf32>
    %23 = arith.addf %3, %21 : vector<8x128xf32>
    %c1_i32 = arith.constant 1 : i32
    %c0_9 = arith.constant 0 : index
    %c0_10 = arith.constant 0 : index
    %24 = vector.load %arg3[%c0_9, %c0_10] : memref<8x128xf32, #tpu.memory_space<vmem>>, vector<8x128xf32>
    %25 = arith.addf %24, %22 : vector<8x128xf32>
    %c0_11 = arith.constant 0 : index
    %c0_12 = arith.constant 0 : index
    %26 = vector.load %arg3[%c0_11, %c0_12] : memref<8x128xf32, #tpu.memory_space<vmem>>, vector<8x128xf32>
    tpu.vector_store %arg3[%c0_11, %c0_12], %25 {strides = array<i32>} : memref<8x128xf32, #tpu.memory_space<vmem>>, vector<8x128xf32>,
    %c0_13 = arith.constant 0 : index
    %c0_14 = arith.constant 0 : index
    %27 = vector.load %arg4[%c0_13, %c0_14] : memref<8x128xf32, #tpu.memory_space<vmem>>, vector<8x128xf32>
    %28 = arith.addf %27, %23 : vector<8x128xf32>
    %c0_15 = arith.constant 0 : index
    %c0_16 = arith.constant 0 : index
    %29 = vector.load %arg4[%c0_15, %c0_16] : memref<8x128xf32, #tpu.memory_space<vmem>>, vector<8x128xf32>
    tpu.vector_store %arg4[%c0_15, %c0_16], %28 {strides = array<i32>} : memref<8x128xf32, #tpu.memory_space<vmem>>, vector<8x128xf32>,
    return
  }
  func.func @transform_0(%arg0: i32) -> (i32, i32) {
    %c0_i32 = arith.constant 0 : i32
    %c0_i32_0 = arith.constant 0 : i32
    return %arg0, %c0_i32 : i32, i32
  }
  func.func @transform_1(%arg0: i32) -> (i32, i32) {
    %c0_i32 = arith.constant 0 : i32
    %c0_i32_0 = arith.constant 0 : i32
    return %arg0, %c0_i32 : i32, i32
  }
  func.func @transform_2(%arg0: i32) -> (i32, i32) {
    %c0_i32 = arith.constant 0 : i32
    %c0_i32_0 = arith.constant 0 : i32
    %c0_i32_1 = arith.constant 0 : i32
    return %c0_i32, %c0_i32_0 : i32, i32
  }
  func.func @transform_3(%arg0: i32) -> (i32, i32) {
    %c0_i32 = arith.constant 0 : i32
    %c0_i32_0 = arith.constant 0 : i32
    %c0_i32_1 = arith.constant 0 : i32
    return %c0_i32, %c0_i32_0 : i32, i32
  }
}

</mosaic_0001>

<llo_original>
// kernel: tpu_custom_call.1
$region0: #{tpu_custom_call.1}
  #allocation0 [shape = 'u32[]', space=smem, size = 0x4, offset = 0x4, fixed_abs, tag = 'smem constant byte address 0x4 - core index']
  #allocation1 [shape = 'u32[72,128]{1,0:T(1,128)}', space=vmem, size = 0x9000, scoped, tag = 'internal scratch']
  %s0 = inlined_call_operand.hbm [shape: f32[16,128], index: 0, kind: input, shape index: {}]
  %s1 = inlined_call_operand.hbm [shape: f32[16,128], index: 1, kind: input, shape index: {}]
  %s2 = inlined_call_operand.hbm [shape: f32[8,128], index: 2, kind: output, shape index: {0}]
  %s3 = inlined_call_operand.hbm [shape: f32[8,128], index: 3, kind: output, shape index: {1}]
  %4 = xla_tuple %s2, %s3
  %s5 = sld [smem:[#allocation0]]
  $region38: #{tpu_custom_call.1} parent=0
    _
  %s7 = ssub.s32 1, %s5
  %s8 = scalar_select 0, %s7, %s5
  $region1: #{tpu_custom_call.1} parent=0
    #allocation2 [shape = 'u8[8192]{0}', space=vmem, size = 0x2000, scoped, tag = 'input window, operand 0, single buffered']
    #allocation3 [shape = 's32[1]{0}', space=sflag, size = 0x4, scoped, tag = 'scoped memory for tpu_custom_call.1']
    #allocation4 [shape = 's32[1]{0}', space=sflag, size = 0x4, scoped, tag = 'scoped memory for tpu_custom_call.1']
    #allocation5 [shape = 'u8[8192]{0}', space=vmem, size = 0x2000, scoped, tag = 'input window, operand 1, single buffered']
    #allocation6 [shape = 's32[1]{0}', space=sflag, size = 0x4, scoped, tag = 'scoped memory for tpu_custom_call.1']
    #allocation7 [shape = 'u8[4096]{0}', space=vmem, size = 0x1000, scoped, tag = 'output window, operand 0, single buffered']
    #allocation8 [shape = 'u8[4096]{0}', space=vmem, size = 0x1000, scoped, tag = 'output window, operand 1, single buffered']
    #allocation9 [shape = 's32[1]{0}', space=sflag, size = 0x4, scoped, tag = 'scoped memory for tpu_custom_call.1']
    %9 = vsyncpa [#allocation3], 0
    %10 = vsyncpa [#allocation6], 0
    %11 = vsyncpa [#allocation4], 0
    %12 = vsyncpa [#allocation9], 0
    // Predicated region
    $region2: #{tpu_custom_call.1} parent=1 // pred_check
      _
    $region3: #{tpu_custom_call.1} parent=1 // pred_check_branch
      %14 = sbr.rel (0) target = $region5
    $region4: #{tpu_custom_call.1} parent=1 // pred_region
      %16 = vsyncadd [#allocation3], 0
      %s17 = sshll.u32 %s0, 4
      %s18 = int_to_ptr.hbm [resolvable:$true] %s17
      %s19 = sshll.u32 [#allocation2], 4
      %s20 = int_to_ptr.vmem [resolvable:$true] %s19
      %25 = dma.hbm_to_vmem [thread:$0]  %s18, 256, %s20, [#allocation3], 128, 128, 8
    $region5: #{tpu_custom_call.1} parent=1 // pred_fallthru
      _
    // Predicated region
    $region6: #{tpu_custom_call.1} parent=1 // pred_check
      _
    $region7: #{tpu_custom_call.1} parent=1 // pred_check_branch
      %27 = sbr.rel (0) target = $region9
    $region8: #{tpu_custom_call.1} parent=1 // pred_region
      %29 = vsyncadd [#allocation6], 0
      %s30 = sshll.u32 %s1, 4
      %s31 = int_to_ptr.hbm [resolvable:$true] %s30
      %s32 = sshll.u32 [#allocation5], 4
      %s33 = int_to_ptr.vmem [resolvable:$true] %s32
      %38 = dma.hbm_to_vmem [thread:$0]  %s31, 256, %s33, [#allocation6], 128, 128, 8
    $region9: #{tpu_custom_call.1} parent=1 // pred_fallthru
      _
    // Predicated region
    $region10: #{tpu_custom_call.1} parent=1 // pred_check
      _
    $region11: #{tpu_custom_call.1} parent=1 // pred_check_branch
      %40 = sbr.rel (0) target = $region13
    $region12: #{tpu_custom_call.1} parent=1 // pred_region
      %42 = dma.done [#allocation3], 256
    $region13: #{tpu_custom_call.1} parent=1 // pred_fallthru
      _
    // Predicated region
    $region14: #{tpu_custom_call.1} parent=1 // pred_check
      _
    $region15: #{tpu_custom_call.1} parent=1 // pred_check_branch
      %44 = sbr.rel (0) target = $region17
    $region16: #{tpu_custom_call.1} parent=1 // pred_region
      %46 = dma.done [#allocation6], 256
    $region17: #{tpu_custom_call.1} parent=1 // pred_fallthru
      _
    %p47 = scmp.eq.s32.totalorder 0, 0
    // Predicated region
    $region18: #{tpu_custom_call.1} parent=1 // pred_check
      %p48 = pneg %p47
    $region19: #{tpu_custom_call.1} parent=1 // pred_check_branch
      %50 = sbr.rel (%p48) target = $region21
    $region20: #{tpu_custom_call.1} parent=1 // pred_region
      %51 = vst [vmem:[#allocation7] sm:$0xff] 0.0
      %52 = vst [vmem:[#allocation8] sm:$0xff] 0.0
    $region21: #{tpu_custom_call.1} parent=1 // pred_fallthru
      _
    %v53 = vld [vmem:[#allocation5] sm:$0xff]
    %v54 = vld [vmem:[#allocation5 + $0x8] sm:$0xff]
    %v55 = vld [vmem:[#allocation2] sm:$0xff]
    %v56 = vld [vmem:[#allocation2 + $0x8] sm:$0xff]
    %v57 = vsub.f32 1.0, %v53
    %v58 = vsub.f32 1.0, %v54
    %v59 = vmax.f32 %v57, 0.0
    %v60 = vmax.f32 %v58, 0.0
    %v61 = vadd.f32 %v55, 1.0
    %v62 = vadd.f32 %v56, 1.0
    %v63 = vmax.f32 %v61, 0.0
    %v64 = vmax.f32 %v62, 0.0
    %v65 = vadd.f32 %v59, %v60
    %v66 = vadd.f32 %v63, %v64
    %v67 = vadd.f32 %v65, 0.0
    %v68 = vadd.f32 %v66, 0.0
    %v69 = vld [vmem:[#allocation7] sm:$0xff]
    %v70 = vadd.f32 %v69, %v67
    %71 = vst [vmem:[#allocation7] sm:$0xff] %v70
    %v72 = vld [vmem:[#allocation8] sm:$0xff]
    %v73 = vadd.f32 %v72, %v68
    %74 = vst [vmem:[#allocation8] sm:$0xff] %v73
    // Predicated region
    $region22: #{tpu_custom_call.1} parent=1 // pred_check
      _
    $region23: #{tpu_custom_call.1} parent=1 // pred_check_branch
      %76 = sbr.rel (0) target = $region25
    $region24: #{tpu_custom_call.1} parent=1 // pred_region
      %78 = vsyncadd [#allocation4], 0
      %s80 = sshll.u32 [#allocation7], 4
      %s81 = int_to_ptr.vmem [resolvable:$true] %s80
      %s82 = sshll.u32 %s2, 4
      %s83 = int_to_ptr.hbm [resolvable:$true] %s82
      %85 = dma.vmem_to_hbm [thread:$0]  %s81, 128, %s83, [#allocation4]
    $region25: #{tpu_custom_call.1} parent=1 // pred_fallthru
      _
    // Predicated region
    $region26: #{tpu_custom_call.1} parent=1 // pred_check
      _
    $region27: #{tpu_custom_call.1} parent=1 // pred_check_branch
      %87 = sbr.rel (0) target = $region29
    $region28: #{tpu_custom_call.1} parent=1 // pred_region
      %89 = vsyncadd [#allocation9], 0
      %s91 = sshll.u32 [#allocation8], 4
      %s92 = int_to_ptr.vmem [resolvable:$true] %s91
      %s93 = sshll.u32 %s3, 4
      %s94 = int_to_ptr.hbm [resolvable:$true] %s93
      %96 = dma.vmem_to_hbm [thread:$0]  %s92, 128, %s94, [#allocation9]
    $region29: #{tpu_custom_call.1} parent=1 // pred_fallthru
      _
    // Predicated region
    $region30: #{tpu_custom_call.1} parent=1 // pred_check
      _
    $region31: #{tpu_custom_call.1} parent=1 // pred_check_branch
      %98 = sbr.rel (0) target = $region33
    $region32: #{tpu_custom_call.1} parent=1 // pred_region
      %100 = dma.done [#allocation4], 128
    $region33: #{tpu_custom_call.1} parent=1 // pred_fallthru
      _
    // Predicated region
    $region34: #{tpu_custom_call.1} parent=1 // pred_check
      _
    $region35: #{tpu_custom_call.1} parent=1 // pred_check_branch
      %102 = sbr.rel (0) target = $region37
    $region36: #{tpu_custom_call.1} parent=1 // pred_region
      %104 = dma.done [#allocation9], 128
    $region37: #{tpu_custom_call.1} parent=1 // pred_fallthru
      _
    %105 = vsyncpa [#allocation3], 1
    %106 = vsyncpa [#allocation6], 1
    %107 = vsyncpa [#allocation4], 1
    %108 = vsyncpa [#allocation9], 1

</llo_original>
